<compile_context>
chip_gen: v5e
topology: v5e:2x2
jax: 0.10.0
libtpu: 0.0.40
codegen_flags: <defaults>
</compile_context>

<pallas_src>
import jax
import jax.numpy as jnp
import numpy as np
from jax.experimental import pallas as pl
from jax.experimental.pallas import tpu as pltpu

INPUT_DIM = 128
HIDDEN_DIM = 128
OUTPUT_DIM = 128
NUM_LAYERS = 4


# --------------------------------------------------------------------------
# Kernel 1: fold the 6 affine layers into one (runs once, single grid step).
# --------------------------------------------------------------------------
def _collapse_kernel(w_in_ref, b_in_ref, w_mid_ref, w_out_ref, b_out_ref,
                     w_tot_ref, b_tot_ref):
    w = w_in_ref[...]                    # [IN, HID]
    b = b_in_ref[...]                    # [1, HID]
    for l in range(NUM_LAYERS):          # statically unrolled (4 iters)
        wl = w_mid_ref[l]                # [HID, HID]
        w = jnp.dot(w, wl, preferred_element_type=jnp.float32)
        b = jnp.dot(b, wl, preferred_element_type=jnp.float32)
    w_out = w_out_ref[...]               # [HID, OUT]
    w_tot_ref[...] = jnp.dot(w, w_out, preferred_element_type=jnp.float32)
    b_tot_ref[...] = (jnp.dot(b, w_out, preferred_element_type=jnp.float32)
                      + b_out_ref[...])


def collapse_params(w_in, b_in, w_mid, w_out, b_out):
    """w_in:[IN,HID], b_in:[HID], w_mid:[L,HID,HID], w_out:[HID,OUT], b_out:[OUT]."""
    b_in2 = b_in.reshape(1, HIDDEN_DIM)
    b_out2 = b_out.reshape(1, OUTPUT_DIM)
    return pl.pallas_call(
        _collapse_kernel,
        out_shape=(jax.ShapeDtypeStruct((INPUT_DIM, OUTPUT_DIM), jnp.float32),
                   jax.ShapeDtypeStruct((1, OUTPUT_DIM), jnp.float32)),
        grid_spec=pltpu.PrefetchScalarGridSpec(
            num_scalar_prefetch=0,
            grid=(1,),
            in_specs=[
                pl.BlockSpec((INPUT_DIM, HIDDEN_DIM), lambda i: (0, 0)),
                pl.BlockSpec((1, HIDDEN_DIM), lambda i: (0, 0)),
                pl.BlockSpec((NUM_LAYERS, HIDDEN_DIM, HIDDEN_DIM),
                             lambda i: (0, 0, 0)),
                pl.BlockSpec((HIDDEN_DIM, OUTPUT_DIM), lambda i: (0, 0)),
                pl.BlockSpec((1, OUTPUT_DIM), lambda i: (0, 0)),
            ],
            out_specs=[pl.BlockSpec((INPUT_DIM, OUTPUT_DIM), lambda i: (0, 0)),
                       pl.BlockSpec((1, OUTPUT_DIM), lambda i: (0, 0))],
        ),
        compiler_params=pltpu.CompilerParams(
            dimension_semantics=("arbitrary",)),
    )(w_in, b_in2, w_mid, w_out, b_out2)


# --------------------------------------------------------------------------
# Kernel 2: batched apply  out = x @ W_total + b_total   (tiled over batch).
# --------------------------------------------------------------------------
def _affine_kernel(x_ref, w_ref, b_ref, o_ref):
    acc = jnp.dot(x_ref[...], w_ref[...], preferred_element_type=jnp.float32)
    o_ref[...] = (acc + b_ref[...]).astype(o_ref.dtype)


def linear_stack(x, w_in, b_in, w_mid, w_out, b_out, *, tm=512,
                 compute_dtype=None):
    """Forward pass of LinearStack.

    x: [B, INPUT_DIM] float32.  Weights already transposed to [in, out]
    (PyTorch stores [out, in]).  compute_dtype=jnp.bfloat16 casts x / W_total
    for the MXU while accumulating in f32 (recommended on v6e/v7x).
    """
    B = x.shape[0]
    # One-shot weight collapse (f32 for accuracy; cost independent of batch).
    w_tot, b_tot = collapse_params(w_in, b_in, w_mid, w_out, b_out)

    if compute_dtype is not None:
        x_c = x.astype(compute_dtype)
        w_c = w_tot.astype(compute_dtype)
    else:
        x_c, w_c = x, w_tot

    # Batch tiling: single full-batch tile when B <= tm, otherwise tiles of
    # tm rows (zero-pad the tail so the grid is exact, slice back after).
    if B <= tm:
        tm_eff, pad = B, 0
    else:
        tm_eff = tm
        padded = pl.cdiv(B, tm_eff) * tm_eff
        pad = padded - B
        if pad:
            x_c = jnp.pad(x_c, ((0, pad), (0, 0)))
    grid = ((B + pad) // tm_eff,)

    out = pl.pallas_call(
        _affine_kernel,
        out_shape=jax.ShapeDtypeStruct((B + pad, OUTPUT_DIM), jnp.float32),
        grid_spec=pltpu.PrefetchScalarGridSpec(
            num_scalar_prefetch=0,
            grid=grid,
            in_specs=[
                pl.BlockSpec((tm_eff, INPUT_DIM), lambda i: (i, 0)),
                # Constant block index -> weights stay resident in VMEM,
                # no re-DMA between grid steps.
                pl.BlockSpec((INPUT_DIM, OUTPUT_DIM), lambda i: (0, 0)),
                pl.BlockSpec((1, OUTPUT_DIM), lambda i: (0, 0)),
            ],
            out_specs=pl.BlockSpec((tm_eff, OUTPUT_DIM), lambda i: (i, 0)),
        ),
        compiler_params=pltpu.CompilerParams(
            dimension_semantics=("parallel",)),
    )(x_c, w_c, b_tot)
    return out[:B] if pad else out


# --------------------------------------------------------------------------
# Params + pure-JAX reference (full un-collapsed chain, PyTorch [out,in]).
# --------------------------------------------------------------------------
def init_params(key):
    ks = jax.random.split(key, 8)
    w_in_t = jax.random.uniform(ks[0], (HIDDEN_DIM, INPUT_DIM),
                                jnp.float32, -0.05, 0.05)
    b_in = jax.random.uniform(ks[1], (HIDDEN_DIM,), jnp.float32, -0.05, 0.05)
    w_mid_t = jax.random.uniform(ks[2], (NUM_LAYERS, HIDDEN_DIM, HIDDEN_DIM),
                                 jnp.float32, -0.05, 0.05)
    w_out_t = jax.random.uniform(ks[3], (OUTPUT_DIM, HIDDEN_DIM),
                                 jnp.float32, -0.05, 0.05)
    b_out = jax.random.uniform(ks[4], (OUTPUT_DIM,), jnp.float32, -0.05, 0.05)
    return w_in_t, b_in, w_mid_t, w_out_t, b_out


def reference_forward(x, w_in_t, b_in, w_mid_t, w_out_t, b_out):
    h = x @ w_in_t.T + b_in
    for l in range(NUM_LAYERS):
        h = h @ w_mid_t[l].T
    return h @ w_out_t.T + b_out


if __name__ == "__main__":
    key = jax.random.PRNGKey(0)
    kx, kx2, ky, kp = jax.random.split(key, 4)

    w_in_t, b_in, w_mid_t, w_out_t, b_out = init_params(kp)
    # Transpose once to the [in, out] layout the kernels expect.
    w_in = jnp.transpose(w_in_t)                  # [128, 128]
    w_mid = jnp.transpose(w_mid_t, (0, 2, 1))     # [4, 128, 128]
    w_out = jnp.transpose(w_out_t)                # [128, 128]

    # --- small batch (single tile, f32) -----------------------------------
    B = 8
    x = jax.random.normal(kx, (B, INPUT_DIM), jnp.float32)
    y = jax.random.randint(ky, (B,), 0, OUTPUT_DIM)  # unused by forward()

    out = jax.block_until_ready(
        linear_stack(x, w_in, b_in, w_mid, w_out, b_out))
    ref = reference_forward(x, w_in_t, b_in, w_mid_t, w_out_t, b_out)
    np.testing.assert_allclose(np.asarray(out), np.asarray(ref),
                               rtol=1e-5, atol=1e-5)

    # --- larger batch (multi-step "parallel" grid, f32) --------------------
    B2 = 1024
    x2 = jax.random.normal(kx2, (B2, INPUT_DIM), jnp.float32)
    out2 = jax.block_until_ready(
        linear_stack(x2, w_in, b_in, w_mid, w_out, b_out, tm=256))
    ref2 = reference_forward(x2, w_in_t, b_in, w_mid_t, w_out_t, b_out)
    np.testing.assert_allclose(np.asarray(out2), np.asarray(ref2),
                               rtol=1e-5, atol=1e-5)

    # --- non-divisible batch (exercises zero-pad + slice tail path) --------
    B3 = 300
    x3 = jax.random.normal(kx, (B3, INPUT_DIM), jnp.float32)
    out3 = jax.block_until_ready(
        linear_stack(x3, w_in, b_in, w_mid, w_out, b_out, tm=256))
    ref3 = reference_forward(x3, w_in_t, b_in, w_mid_t, w_out_t, b_out)
    np.testing.assert_allclose(np.asarray(out3), np.asarray(ref3),
                               rtol=1e-5, atol=1e-5)

    # --- bf16 inputs/weights, f32 accumulation (v6e/v7x fast path) ---------
    out_bf16 = jax.block_until_ready(
        linear_stack(x2, w_in, b_in, w_mid, w_out, b_out, tm=512,
                     compute_dtype=jnp.bfloat16))
    np.testing.assert_allclose(np.asarray(out_bf16), np.asarray(ref2),
                               rtol=2e-2, atol=2e-2)

    print("KERNEL_OK")
</pallas_src>

<mosaic_0001>
module attributes {stable_mosaic.version = 11 : i64} {
  func.func @_collapse_kernel(%arg0: i32, %arg1: memref<128x128xf32, #tpu.memory_space<vmem>>, %arg2: memref<1x128xf32, #tpu.memory_space<vmem>>, %arg3: memref<4x128x128xf32, #tpu.memory_space<vmem>>, %arg4: memref<128x128xf32, #tpu.memory_space<vmem>>, %arg5: memref<1x128xf32, #tpu.memory_space<vmem>>, %arg6: memref<128x128xf32, #tpu.memory_space<vmem>>, %arg7: memref<1x128xf32, #tpu.memory_space<vmem>>) attributes {dimension_semantics = [#tpu.dimension_semantics<arbitrary>], iteration_bounds = array<i64: 1>, scalar_prefetch = 0 : i64, scratch_operands = 0 : i64, tpu.core_type = #tpu.core_type<tc>, window_params = [{pipeline_mode = #tpu.pipeline_mode<synchronous>, transform_indices = @transform_0, window_bounds = array<i64: 128, 128>}, {pipeline_mode = #tpu.pipeline_mode<synchronous>, transform_indices = @transform_1, window_bounds = array<i64: 1, 128>}, {pipeline_mode = #tpu.pipeline_mode<synchronous>, transform_indices = @transform_2, window_bounds = array<i64: 4, 128, 128>}, {pipeline_mode = #tpu.pipeline_mode<synchronous>, transform_indices = @transform_3, window_bounds = array<i64: 128, 128>}, {pipeline_mode = #tpu.pipeline_mode<synchronous>, transform_indices = @transform_4, window_bounds = array<i64: 1, 128>}, {pipeline_mode = #tpu.pipeline_mode<synchronous>, transform_indices = @transform_5, window_bounds = array<i64: 128, 128>}, {pipeline_mode = #tpu.pipeline_mode<synchronous>, transform_indices = @transform_6, window_bounds = array<i64: 1, 128>}]} {
    %c0 = arith.constant 0 : index
    %c0_0 = arith.constant 0 : index
    %0 = vector.load %arg1[%c0, %c0_0] : memref<128x128xf32, #tpu.memory_space<vmem>>, vector<128x128xf32>
    %c0_1 = arith.constant 0 : index
    %c0_2 = arith.constant 0 : index
    %1 = vector.load %arg2[%c0_1, %c0_2] : memref<1x128xf32, #tpu.memory_space<vmem>>, vector<1x128xf32>
    %c0_3 = arith.constant 0 : index
    %c0_4 = arith.constant 0 : index
    %c0_5 = arith.constant 0 : index
    %2 = vector.load %arg3[%c0_3, %c0_4, %c0_5] : memref<4x128x128xf32, #tpu.memory_space<vmem>>, vector<1x128x128xf32>
    %3 = vector.shape_cast %2 : vector<1x128x128xf32> to vector<128x128xf32>
    %cst = arith.constant dense<0.000000e+00> : vector<128x128xf32>
    %4 = tpu.matmul %0, %3, %cst {dimension_numbers = #tpu.dot_dimension_numbers<[1], [0], [0], [1], [0, 0, 1, 1], [], []>} : vector<128x128xf32>, vector<128x128xf32>, vector<128x128xf32> -> vector<128x128xf32>
    %cst_6 = arith.constant dense<0.000000e+00> : vector<1x128xf32>
    %5 = tpu.matmul %1, %3, %cst_6 {dimension_numbers = #tpu.dot_dimension_numbers<[1], [0], [0], [1], [0, 0, 1, 1], [], []>} : vector<1x128xf32>, vector<128x128xf32>, vector<1x128xf32> -> vector<1x128xf32>
    %c1 = arith.constant 1 : index
    %c0_7 = arith.constant 0 : index
    %c0_8 = arith.constant 0 : index
    %6 = vector.load %arg3[%c1, %c0_7, %c0_8] : memref<4x128x128xf32, #tpu.memory_space<vmem>>, vector<1x128x128xf32>
    %7 = vector.shape_cast %6 : vector<1x128x128xf32> to vector<128x128xf32>
    %cst_9 = arith.constant dense<0.000000e+00> : vector<128x128xf32>
    %8 = tpu.matmul %4, %7, %cst_9 {dimension_numbers = #tpu.dot_dimension_numbers<[1], [0], [0], [1], [0, 0, 1, 1], [], []>} : vector<128x128xf32>, vector<128x128xf32>, vector<128x128xf32> -> vector<128x128xf32>
    %cst_10 = arith.constant dense<0.000000e+00> : vector<1x128xf32>
    %9 = tpu.matmul %5, %7, %cst_10 {dimension_numbers = #tpu.dot_dimension_numbers<[1], [0], [0], [1], [0, 0, 1, 1], [], []>} : vector<1x128xf32>, vector<128x128xf32>, vector<1x128xf32> -> vector<1x128xf32>
    %c2 = arith.constant 2 : index
    %c0_11 = arith.constant 0 : index
    %c0_12 = arith.constant 0 : index
    %10 = vector.load %arg3[%c2, %c0_11, %c0_12] : memref<4x128x128xf32, #tpu.memory_space<vmem>>, vector<1x128x128xf32>
    %11 = vector.shape_cast %10 : vector<1x128x128xf32> to vector<128x128xf32>
    %cst_13 = arith.constant dense<0.000000e+00> : vector<128x128xf32>
    %12 = tpu.matmul %8, %11, %cst_13 {dimension_numbers = #tpu.dot_dimension_numbers<[1], [0], [0], [1], [0, 0, 1, 1], [], []>} : vector<128x128xf32>, vector<128x128xf32>, vector<128x128xf32> -> vector<128x128xf32>
    %cst_14 = arith.constant dense<0.000000e+00> : vector<1x128xf32>
    %13 = tpu.matmul %9, %11, %cst_14 {dimension_numbers = #tpu.dot_dimension_numbers<[1], [0], [0], [1], [0, 0, 1, 1], [], []>} : vector<1x128xf32>, vector<128x128xf32>, vector<1x128xf32> -> vector<1x128xf32>
    %c3 = arith.constant 3 : index
    %c0_15 = arith.constant 0 : index
    %c0_16 = arith.constant 0 : index
    %14 = vector.load %arg3[%c3, %c0_15, %c0_16] : memref<4x128x128xf32, #tpu.memory_space<vmem>>, vector<1x128x128xf32>
    %15 = vector.shape_cast %14 : vector<1x128x128xf32> to vector<128x128xf32>
    %cst_17 = arith.constant dense<0.000000e+00> : vector<128x128xf32>
    %16 = tpu.matmul %12, %15, %cst_17 {dimension_numbers = #tpu.dot_dimension_numbers<[1], [0], [0], [1], [0, 0, 1, 1], [], []>} : vector<128x128xf32>, vector<128x128xf32>, vector<128x128xf32> -> vector<128x128xf32>
    %cst_18 = arith.constant dense<0.000000e+00> : vector<1x128xf32>
    %17 = tpu.matmul %13, %15, %cst_18 {dimension_numbers = #tpu.dot_dimension_numbers<[1], [0], [0], [1], [0, 0, 1, 1], [], []>} : vector<1x128xf32>, vector<128x128xf32>, vector<1x128xf32> -> vector<1x128xf32>
    %c0_19 = arith.constant 0 : index
    %c0_20 = arith.constant 0 : index
    %18 = vector.load %arg4[%c0_19, %c0_20] : memref<128x128xf32, #tpu.memory_space<vmem>>, vector<128x128xf32>
    %cst_21 = arith.constant dense<0.000000e+00> : vector<128x128xf32>
    %19 = tpu.matmul %16, %18, %cst_21 {dimension_numbers = #tpu.dot_dimension_numbers<[1], [0], [0], [1], [0, 0, 1, 1], [], []>} : vector<128x128xf32>, vector<128x128xf32>, vector<128x128xf32> -> vector<128x128xf32>
    %c0_22 = arith.constant 0 : index
    %c0_23 = arith.constant 0 : index
    %20 = vector.load %arg6[%c0_22, %c0_23] : memref<128x128xf32, #tpu.memory_space<vmem>>, vector<128x128xf32>
    tpu.vector_store %arg6[%c0_22, %c0_23], %19 {strides = array<i32>} : memref<128x128xf32, #tpu.memory_space<vmem>>, vector<128x128xf32>,
    %cst_24 = arith.constant dense<0.000000e+00> : vector<1x128xf32>
    %21 = tpu.matmul %17, %18, %cst_24 {dimension_numbers = #tpu.dot_dimension_numbers<[1], [0], [0], [1], [0, 0, 1, 1], [], []>} : vector<1x128xf32>, vector<128x128xf32>, vector<1x128xf32> -> vector<1x128xf32>
    %c0_25 = arith.constant 0 : index
    %c0_26 = arith.constant 0 : index
    %22 = vector.load %arg5[%c0_25, %c0_26] : memref<1x128xf32, #tpu.memory_space<vmem>>, vector<1x128xf32>
    %23 = arith.addf %21, %22 : vector<1x128xf32>
    %c0_27 = arith.constant 0 : index
    %c0_28 = arith.constant 0 : index
    %24 = vector.load %arg7[%c0_27, %c0_28] : memref<1x128xf32, #tpu.memory_space<vmem>>, vector<1x128xf32>
    tpu.vector_store %arg7[%c0_27, %c0_28], %23 {strides = array<i32>} : memref<1x128xf32, #tpu.memory_space<vmem>>, vector<1x128xf32>,
    return
  }
  func.func @transform_0(%arg0: i32) -> (i32, i32) {
    %c0_i32 = arith.constant 0 : i32
    %c0_i32_0 = arith.constant 0 : i32
    %c0_i32_1 = arith.constant 0 : i32
    return %c0_i32, %c0_i32_0 : i32, i32
  }
  func.func @transform_1(%arg0: i32) -> (i32, i32) {
    %c0_i32 = arith.constant 0 : i32
    %c0_i32_0 = arith.constant 0 : i32
    %c0_i32_1 = arith.constant 0 : i32
    return %c0_i32, %c0_i32_0 : i32, i32
  }
  func.func @transform_2(%arg0: i32) -> (i32, i32, i32) {
    %c0_i32 = arith.constant 0 : i32
    %c0_i32_0 = arith.constant 0 : i32
    %c0_i32_1 = arith.constant 0 : i32
    %c0_i32_2 = arith.constant 0 : i32
    return %c0_i32, %c0_i32_0, %c0_i32_1 : i32, i32, i32
  }
  func.func @transform_3(%arg0: i32) -> (i32, i32) {
    %c0_i32 = arith.constant 0 : i32
    %c0_i32_0 = arith.constant 0 : i32
    %c0_i32_1 = arith.constant 0 : i32
    return %c0_i32, %c0_i32_0 : i32, i32
  }
  func.func @transform_4(%arg0: i32) -> (i32, i32) {
    %c0_i32 = arith.constant 0 : i32
    %c0_i32_0 = arith.constant 0 : i32
    %c0_i32_1 = arith.constant 0 : i32
    return %c0_i32, %c0_i32_0 : i32, i32
  }
  func.func @transform_5(%arg0: i32) -> (i32, i32) {
    %c0_i32 = arith.constant 0 : i32
    %c0_i32_0 = arith.constant 0 : i32
    %c0_i32_1 = arith.constant 0 : i32
    return %c0_i32, %c0_i32_0 : i32, i32
  }
  func.func @transform_6(%arg0: i32) -> (i32, i32) {
    %c0_i32 = arith.constant 0 : i32
    %c0_i32_0 = arith.constant 0 : i32
    %c0_i32_1 = arith.constant 0 : i32
    return %c0_i32, %c0_i32_0 : i32, i32
  }
}

</mosaic_0001>

<llo_original>
// kernel: tpu_custom_call.1
$region0: #{tpu_custom_call.1}
  #allocation0 [shape = 'u32[]', space=smem, size = 0x4, offset = 0x4, fixed_abs, tag = 'smem constant byte address 0x4 - core index']
  #allocation1 [shape = 'u32[72,128]{1,0:T(1,128)}', space=vmem, size = 0x9000, scoped, tag = 'internal scratch']
  %s0 = inlined_call_operand.hbm [shape: f32[128,128], index: 0, kind: input, shape index: {}]
  %s1 = inlined_call_operand.hbm [shape: f32[1,128], index: 1, kind: input, shape index: {}]
  %s2 = inlined_call_operand.hbm [shape: f32[4,128,128], index: 2, kind: input, shape index: {}]
  %s3 = inlined_call_operand.hbm [shape: f32[128,128], index: 3, kind: input, shape index: {}]
  %s4 = inlined_call_operand.vmem [shape: f32[1,128], index: 4, kind: input, shape index: {}]
  %s5 = inlined_call_operand.hbm [shape: f32[128,128], index: 5, kind: output, shape index: {0}]
  %s6 = inlined_call_operand.hbm [shape: f32[1,128], index: 6, kind: output, shape index: {1}]
  %7 = xla_tuple %s5, %s6
  %s8 = sld [smem:[#allocation0]]
  $region54: #{tpu_custom_call.1} parent=0
    _
  %s10 = ssub.s32 1, %s8
  %s11 = scalar_select 0, %s10, %s8
  $region1: #{tpu_custom_call.1} parent=0
    #allocation2 [shape = 'u8[65536]{0}', space=vmem, size = 0x10000, scoped, tag = 'input window, operand 0, single buffered']
    #allocation3 [shape = 's32[1]{0}', space=sflag, size = 0x4, scoped, tag = 'scoped memory for tpu_custom_call.1']
    #allocation4 [shape = 's32[1]{0}', space=sflag, size = 0x4, scoped, tag = 'scoped memory for tpu_custom_call.1']
    #allocation5 [shape = 'u8[512]{0}', space=vmem, size = 0x400, scoped, tag = 'input window, operand 1, single buffered']
    #allocation6 [shape = 's32[1]{0}', space=sflag, size = 0x4, scoped, tag = 'scoped memory for tpu_custom_call.1']
    #allocation7 [shape = 'u8[262144]{0}', space=vmem, size = 0x40000, scoped, tag = 'input window, operand 2, single buffered']
    #allocation8 [shape = 'u8[65536]{0}', space=vmem, size = 0x10000, scoped, tag = 'input window, operand 3, single buffered']
    #allocation9 [shape = 's32[1]{0}', space=sflag, size = 0x4, scoped, tag = 'scoped memory for tpu_custom_call.1']
    #allocation10 [shape = 'u8[65536]{0}', space=vmem, size = 0x10000, scoped, tag = 'output window, operand 0, single buffered']
    #allocation11 [shape = 'u8[512]{0}', space=vmem, size = 0x400, scoped, tag = 'output window, operand 1, single buffered']
    #allocation12 [shape = 's32[1]{0}', space=sflag, size = 0x4, scoped, tag = 'scoped memory for tpu_custom_call.1']
    %12 = vsyncpa [#allocation3], 0
    %13 = vsyncpa [#allocation6], 0
    %14 = vsyncpa [#allocation9], 0
    %15 = vsyncpa [#allocation4], 0
    %16 = vsyncpa [#allocation12], 0
    // Predicated region
    $region2: #{tpu_custom_call.1} parent=1 // pred_check
      _
    $region3: #{tpu_custom_call.1} parent=1 // pred_check_branch
      %18 = sbr.rel (0) target = $region5
    $region4: #{tpu_custom_call.1} parent=1 // pred_region
      %20 = vsyncadd [#allocation3], 0
      %s21 = sshll.u32 %s0, 4
      %s22 = int_to_ptr.hbm [resolvable:$true] %s21
      %s23 = sshll.u32 [#allocation2], 4
      %s24 = int_to_ptr.vmem [resolvable:$true] %s23
      %29 = dma.hbm_to_vmem [thread:$0]  %s22, 2048, %s24, [#allocation3], 128, 128, 8
    $region5: #{tpu_custom_call.1} parent=1 // pred_fallthru
      _
    // Predicated region
    $region6: #{tpu_custom_call.1} parent=1 // pred_check
      _
    $region7: #{tpu_custom_call.1} parent=1 // pred_check_branch
      %31 = sbr.rel (0) target = $region9
    $region8: #{tpu_custom_call.1} parent=1 // pred_region
      %33 = vsyncadd [#allocation6], 0
      %s35 = sshll.u32 %s1, 4
      %s36 = int_to_ptr.hbm [resolvable:$true] %s35
      %s37 = sshll.u32 [#allocation5], 4
      %s38 = int_to_ptr.vmem [resolvable:$true] %s37
      %40 = dma.hbm_to_vmem [thread:$0]  %s36, 16, %s38, [#allocation6]
    $region9: #{tpu_custom_call.1} parent=1 // pred_fallthru
      _
    // Predicated region
    $region10: #{tpu_custom_call.1} parent=1 // pred_check
      _
    $region11: #{tpu_custom_call.1} parent=1 // pred_check_branch
      %42 = sbr.rel (0) target = $region13
    $region12: #{tpu_custom_call.1} parent=1 // pred_region
      %44 = vsyncadd [#allocation6], 0
      %s45 = sshll.u32 %s2, 4
      %s46 = int_to_ptr.hbm [resolvable:$true] %s45
      %s47 = sshll.u32 [#allocation7], 4
      %s48 = int_to_ptr.vmem [resolvable:$true] %s47
      %53 = dma.hbm_to_vmem [thread:$0]  %s46, 8192, %s48, [#allocation6], 128, 128, 8
    $region13: #{tpu_custom_call.1} parent=1 // pred_fallthru
      _
    // Predicated region
    $region14: #{tpu_custom_call.1} parent=1 // pred_check
      _
    $region15: #{tpu_custom_call.1} parent=1 // pred_check_branch
      %55 = sbr.rel (0) target = $region17
    $region16: #{tpu_custom_call.1} parent=1 // pred_region
      %57 = vsyncadd [#allocation9], 0
      %s58 = sshll.u32 %s3, 4
      %s59 = int_to_ptr.hbm [resolvable:$true] %s58
      %s60 = sshll.u32 [#allocation8], 4
      %s61 = int_to_ptr.vmem [resolvable:$true] %s60
      %66 = dma.hbm_to_vmem [thread:$0]  %s59, 2048, %s61, [#allocation9], 128, 128, 8
    $region17: #{tpu_custom_call.1} parent=1 // pred_fallthru
      _
    // Predicated region
    $region18: #{tpu_custom_call.1} parent=1 // pred_check
      _
    $region19: #{tpu_custom_call.1} parent=1 // pred_check_branch
      %68 = sbr.rel (0) target = $region21
    $region20: #{tpu_custom_call.1} parent=1 // pred_region
      _
    $region21: #{tpu_custom_call.1} parent=1 // pred_fallthru
      _
    // Predicated region
    $region22: #{tpu_custom_call.1} parent=1 // pred_check
      _
    $region23: #{tpu_custom_call.1} parent=1 // pred_check_branch
      %70 = sbr.rel (0) target = $region25
    $region24: #{tpu_custom_call.1} parent=1 // pred_region
      %72 = dma.done [#allocation3], 2048
    $region25: #{tpu_custom_call.1} parent=1 // pred_fallthru
      _
    // Predicated region
    $region26: #{tpu_custom_call.1} parent=1 // pred_check
      _
    $region27: #{tpu_custom_call.1} parent=1 // pred_check_branch
      %74 = sbr.rel (0) target = $region29
    $region28: #{tpu_custom_call.1} parent=1 // pred_region
      %76 = dma.done [#allocation6], 16
    $region29: #{tpu_custom_call.1} parent=1 // pred_fallthru
      _
    // Predicated region
    $region30: #{tpu_custom_call.1} parent=1 // pred_check
      _
    $region31: #{tpu_custom_call.1} parent=1 // pred_check_branch
      %78 = sbr.rel (0) target = $region33
    $region32: #{tpu_custom_call.1} parent=1 // pred_region
      %80 = dma.done [#allocation6], 8192
    $region33: #{tpu_custom_call.1} parent=1 // pred_fallthru
      _
    // Predicated region
    $region34: #{tpu_custom_call.1} parent=1 // pred_check
      _
    $region35: #{tpu_custom_call.1} parent=1 // pred_check_branch
      %82 = sbr.rel (0) target = $region37
    $region36: #{tpu_custom_call.1} parent=1 // pred_region
      %84 = dma.done [#allocation9], 2048
    $region37: #{tpu_custom_call.1} parent=1 // pred_fallthru
      _
    %v85 = vld [vmem:[#allocation2] sm:$0xff]
    %v86 = vld [vmem:[#allocation2 + $0x8] sm:$0xff]
    %v87 = vld [vmem:[#allocation2 + $0x10] sm:$0xff]
    %v88 = vld [vmem:[#allocation2 + $0x18] sm:$0xff]
    %v89 = vld [vmem:[#allocation2 + $0x20] sm:$0xff]
    %v90 = vld [vmem:[#allocation2 + $0x28] sm:$0xff]
    %v91 = vld [vmem:[#allocation2 + $0x30] sm:$0xff]
    %v92 = vld [vmem:[#allocation2 + $0x38] sm:$0xff]
    %v93 = vld [vmem:[#allocation2 + $0x40] sm:$0xff]
    %v94 = vld [vmem:[#allocation2 + $0x48] sm:$0xff]
    %v95 = vld [vmem:[#allocation2 + $0x50] sm:$0xff]
    %v96 = vld [vmem:[#allocation2 + $0x58] sm:$0xff]
    %v97 = vld [vmem:[#allocation2 + $0x60] sm:$0xff]
    %v98 = vld [vmem:[#allocation2 + $0x68] sm:$0xff]
    %v99 = vld [vmem:[#allocation2 + $0x70] sm:$0xff]
    %v100 = vld [vmem:[#allocation2 + $0x78] sm:$0xff]
    %v101 = vld [vmem:[#allocation5] sm:$0x1]
    %v102 = vld [vmem:[#allocation7] sm:$0xff]
    %v103 = vld [vmem:[#allocation7 + $0x8] sm:$0xff]
    %v104 = vld [vmem:[#allocation7 + $0x10] sm:$0xff]
    %v105 = vld [vmem:[#allocation7 + $0x18] sm:$0xff]
    %v106 = vld [vmem:[#allocation7 + $0x20] sm:$0xff]
    %v107 = vld [vmem:[#allocation7 + $0x28] sm:$0xff]
    %v108 = vld [vmem:[#allocation7 + $0x30] sm:$0xff]
    %v109 = vld [vmem:[#allocation7 + $0x38] sm:$0xff]
    %v110 = vld [vmem:[#allocation7 + $0x40] sm:$0xff]
    %v111 = vld [vmem:[#allocation7 + $0x48] sm:$0xff]
    %v112 = vld [vmem:[#allocation7 + $0x50] sm:$0xff]
    %v113 = vld [vmem:[#allocation7 + $0x58] sm:$0xff]
    %v114 = vld [vmem:[#allocation7 + $0x60] sm:$0xff]
    %v115 = vld [vmem:[#allocation7 + $0x68] sm:$0xff]
    %v116 = vld [vmem:[#allocation7 + $0x70] sm:$0xff]
    %v117 = vld [vmem:[#allocation7 + $0x78] sm:$0xff]
    %118 = vmatpush.msra.mxu0 %v117
    %119 = vmatpush.msra.mxu0 %v116
    %120 = vmatpush.msra.mxu0 %v115
    %121 = vmatpush.msra.mxu0 %v114
    %122 = vmatpush.msra.mxu0 %v113
    %123 = vmatpush.msra.mxu0 %v112
    %124 = vmatpush.msra.mxu0 %v111
    %125 = vmatpush.msra.mxu0 %v110
    %126 = vmatpush.msra.mxu0 %v109
    %127 = vmatpush.msra.mxu0 %v108
    %128 = vmatpush.msra.mxu0 %v107
    %129 = vmatpush.msra.mxu0 %v106
    %130 = vmatpush.msra.mxu0 %v105
    %131 = vmatpush.msra.mxu0 %v104
    %132 = vmatpush.msra.mxu0 %v103
    %133 = vmatpush.msra.mxu0 %v102
    %134 = vmatmul.f32.gmra.mxu0 %v85
    %v135 = vpop.f32.mrf.mxu0
    %v136 = vadd.f32 0.0, %v135
    %137 = vmatmul.f32.gmra.mxu0 %v86
    %v138 = vpop.f32.mrf.mxu0
    %v139 = vadd.f32 0.0, %v138
    %140 = vmatmul.f32.gmra.mxu0 %v87
    %v141 = vpop.f32.mrf.mxu0
    %v142 = vadd.f32 0.0, %v141
    %143 = vmatmul.f32.gmra.mxu0 %v88
    %v144 = vpop.f32.mrf.mxu0
    %v145 = vadd.f32 0.0, %v144
    %146 = vmatmul.f32.gmra.mxu0 %v89
    %v147 = vpop.f32.mrf.mxu0
    %v148 = vadd.f32 0.0, %v147
    %149 = vmatmul.f32.gmra.mxu0 %v90
    %v150 = vpop.f32.mrf.mxu0
    %v151 = vadd.f32 0.0, %v150
    %152 = vmatmul.f32.gmra.mxu0 %v91
    %v153 = vpop.f32.mrf.mxu0
    %v154 = vadd.f32 0.0, %v153
    %155 = vmatmul.f32.gmra.mxu0 %v92
    %v156 = vpop.f32.mrf.mxu0
    %v157 = vadd.f32 0.0, %v156
    %158 = vmatmul.f32.gmra.mxu0 %v93
    %v159 = vpop.f32.mrf.mxu0
    %v160 = vadd.f32 0.0, %v159
    %161 = vmatmul.f32.gmra.mxu0 %v94
    %v162 = vpop.f32.mrf.mxu0
    %v163 = vadd.f32 0.0, %v162
    %164 = vmatmul.f32.gmra.mxu0 %v95
    %v165 = vpop.f32.mrf.mxu0
    %v166 = vadd.f32 0.0, %v165
    %167 = vmatmul.f32.gmra.mxu0 %v96
    %v168 = vpop.f32.mrf.mxu0
    %v169 = vadd.f32 0.0, %v168
    %170 = vmatmul.f32.gmra.mxu0 %v97
    %v171 = vpop.f32.mrf.mxu0
    %v172 = vadd.f32 0.0, %v171
    %173 = vmatmul.f32.gmra.mxu0 %v98
    %v174 = vpop.f32.mrf.mxu0
    %v175 = vadd.f32 0.0, %v174
    %176 = vmatmul.f32.gmra.mxu0 %v99
    %v177 = vpop.f32.mrf.mxu0
    %v178 = vadd.f32 0.0, %v177
    %179 = vmatmul.f32.gmra.mxu0 %v100
    %v180 = vpop.f32.mrf.mxu0
    %v181 = vadd.f32 0.0, %v180
    %182 = vdwg.mxu0
    %183 = vmatpush.msra.mxu0 %v117
    %184 = vmatpush.msra.mxu0 %v116
    %185 = vmatpush.msra.mxu0 %v115
    %186 = vmatpush.msra.mxu0 %v114
    %187 = vmatpush.msra.mxu0 %v113
    %188 = vmatpush.msra.mxu0 %v112
    %189 = vmatpush.msra.mxu0 %v111
    %190 = vmatpush.msra.mxu0 %v110
    %191 = vmatpush.msra.mxu0 %v109
    %192 = vmatpush.msra.mxu0 %v108
    %193 = vmatpush.msra.mxu0 %v107
    %194 = vmatpush.msra.mxu0 %v106
    %195 = vmatpush.msra.mxu0 %v105
    %196 = vmatpush.msra.mxu0 %v104
    %197 = vmatpush.msra.mxu0 %v103
    %198 = vmatpush.msra.mxu0 %v102
    %199 = vmatmul.f32.gmra.mxu0 %v101
    %v200 = vpop.f32.mrf.mxu0
    %v201 = vadd.f32 0.0, %v200
    %202 = vdwg.mxu0
    %s203 = scalar_lea.vmem [#allocation7], 128
    %v204 = vld [vmem:[%s203] sm:$0xff]
    %v205 = vld [vmem:[%s203 + $0x8] sm:$0xff]
    %v206 = vld [vmem:[%s203 + $0x10] sm:$0xff]
    %v207 = vld [vmem:[%s203 + $0x18] sm:$0xff]
    %v208 = vld [vmem:[%s203 + $0x20] sm:$0xff]
    %v209 = vld [vmem:[%s203 + $0x28] sm:$0xff]
    %v210 = vld [vmem:[%s203 + $0x30] sm:$0xff]
    %v211 = vld [vmem:[%s203 + $0x38] sm:$0xff]
    %v212 = vld [vmem:[%s203 + $0x40] sm:$0xff]
    %v213 = vld [vmem:[%s203 + $0x48] sm:$0xff]
    %v214 = vld [vmem:[%s203 + $0x50] sm:$0xff]
    %v215 = vld [vmem:[%s203 + $0x58] sm:$0xff]
    %v216 = vld [vmem:[%s203 + $0x60] sm:$0xff]
    %v217 = vld [vmem:[%s203 + $0x68] sm:$0xff]
    %v218 = vld [vmem:[%s203 + $0x70] sm:$0xff]
    %v219 = vld [vmem:[%s203 + $0x78] sm:$0xff]
    %220 = vmatpush.msra.mxu0 %v219
    %221 = vmatpush.msra.mxu0 %v218
    %222 = vmatpush.msra.mxu0 %v217
    %223 = vmatpush.msra.mxu0 %v216
    %224 = vmatpush.msra.mxu0 %v215
    %225 = vmatpush.msra.mxu0 %v214
    %226 = vmatpush.msra.mxu0 %v213
    %227 = vmatpush.msra.mxu0 %v212
    %228 = vmatpush.msra.mxu0 %v211
    %229 = vmatpush.msra.mxu0 %v210
    %230 = vmatpush.msra.mxu0 %v209
    %231 = vmatpush.msra.mxu0 %v208
    %232 = vmatpush.msra.mxu0 %v207
    %233 = vmatpush.msra.mxu0 %v206
    %234 = vmatpush.msra.mxu0 %v205
    %235 = vmatpush.msra.mxu0 %v204
    %236 = vmatmul.f32.gmra.mxu0 %v136
    %v237 = vpop.f32.mrf.mxu0
    %v238 = vadd.f32 0.0, %v237
    %239 = vmatmul.f32.gmra.mxu0 %v139
    %v240 = vpop.f32.mrf.mxu0
    %v241 = vadd.f32 0.0, %v240
    %242 = vmatmul.f32.gmra.mxu0 %v142
    %v243 = vpop.f32.mrf.mxu0
    %v244 = vadd.f32 0.0, %v243
    %245 = vmatmul.f32.gmra.mxu0 %v145
    %v246 = vpop.f32.mrf.mxu0
    %v247 = vadd.f32 0.0, %v246
    %248 = vmatmul.f32.gmra.mxu0 %v148
    %v249 = vpop.f32.mrf.mxu0
    %v250 = vadd.f32 0.0, %v249
    %251 = vmatmul.f32.gmra.mxu0 %v151
    %v252 = vpop.f32.mrf.mxu0
    %v253 = vadd.f32 0.0, %v252
    %254 = vmatmul.f32.gmra.mxu0 %v154
    %v255 = vpop.f32.mrf.mxu0
    %v256 = vadd.f32 0.0, %v255
    %257 = vmatmul.f32.gmra.mxu0 %v157
    %v258 = vpop.f32.mrf.mxu0
    %v259 = vadd.f32 0.0, %v258
    %260 = vmatmul.f32.gmra.mxu0 %v160
    %v261 = vpop.f32.mrf.mxu0
    %v262 = vadd.f32 0.0, %v261
    %263 = vmatmul.f32.gmra.mxu0 %v163
    %v264 = vpop.f32.mrf.mxu0
    %v265 = vadd.f32 0.0, %v264
    %266 = vmatmul.f32.gmra.mxu0 %v166
    %v267 = vpop.f32.mrf.mxu0
    %v268 = vadd.f32 0.0, %v267
    %269 = vmatmul.f32.gmra.mxu0 %v169
    %v270 = vpop.f32.mrf.mxu0
    %v271 = vadd.f32 0.0, %v270
    %272 = vmatmul.f32.gmra.mxu0 %v172
    %v273 = vpop.f32.mrf.mxu0
    %v274 = vadd.f32 0.0, %v273
    %275 = vmatmul.f32.gmra.mxu0 %v175
    %v276 = vpop.f32.mrf.mxu0
    %v277 = vadd.f32 0.0, %v276
    %278 = vmatmul.f32.gmra.mxu0 %v178
    %v279 = vpop.f32.mrf.mxu0
    %v280 = vadd.f32 0.0, %v279
    %281 = vmatmul.f32.gmra.mxu0 %v181
    %v282 = vpop.f32.mrf.mxu0
    %v283 = vadd.f32 0.0, %v282
    %284 = vdwg.mxu0
    %285 = vmatpush.msra.mxu0 %v219
    %286 = vmatpush.msra.mxu0 %v218
    %287 = vmatpush.msra.mxu0 %v217
    %288 = vmatpush.msra.mxu0 %v216
    %289 = vmatpush.msra.mxu0 %v215
    %290 = vmatpush.msra.mxu0 %v214
    %291 = vmatpush.msra.mxu0 %v213
    %292 = vmatpush.msra.mxu0 %v212
    %293 = vmatpush.msra.mxu0 %v211
    %294 = vmatpush.msra.mxu0 %v210
    %295 = vmatpush.msra.mxu0 %v209
    %296 = vmatpush.msra.mxu0 %v208
    %297 = vmatpush.msra.mxu0 %v207
    %298 = vmatpush.msra.mxu0 %v206
    %299 = vmatpush.msra.mxu0 %v205
    %300 = vmatpush.msra.mxu0 %v204
    %301 = vmatmul.f32.gmra.mxu0 %v201
    %v302 = vpop.f32.mrf.mxu0
    %v303 = vadd.f32 0.0, %v302
    %304 = vdwg.mxu0
    %s305 = scalar_lea.vmem [#allocation7], 256
    %v306 = vld [vmem:[%s305] sm:$0xff]
    %v307 = vld [vmem:[%s305 + $0x8] sm:$0xff]
    %v308 = vld [vmem:[%s305 + $0x10] sm:$0xff]
    %v309 = vld [vmem:[%s305 + $0x18] sm:$0xff]
    %v310 = vld [vmem:[%s305 + $0x20] sm:$0xff]
    %v311 = vld [vmem:[%s305 + $0x28] sm:$0xff]
    %v312 = vld [vmem:[%s305 + $0x30] sm:$0xff]
    %v313 = vld [vmem:[%s305 + $0x38] sm:$0xff]
    %v314 = vld [vmem:[%s305 + $0x40] sm:$0xff]
    %v315 = vld [vmem:[%s305 + $0x48] sm:$0xff]
    %v316 = vld [vmem:[%s305 + $0x50] sm:$0xff]
    %v317 = vld [vmem:[%s305 + $0x58] sm:$0xff]
    %v318 = vld [vmem:[%s305 + $0x60] sm:$0xff]
    %v319 = vld [vmem:[%s305 + $0x68] sm:$0xff]
    %v320 = vld [vmem:[%s305 + $0x70] sm:$0xff]
    %v321 = vld [vmem:[%s305 + $0x78] sm:$0xff]
    %322 = vmatpush.msra.mxu0 %v321
    %323 = vmatpush.msra.mxu0 %v320
    %324 = vmatpush.msra.mxu0 %v319
    %325 = vmatpush.msra.mxu0 %v318
    %326 = vmatpush.msra.mxu0 %v317
    %327 = vmatpush.msra.mxu0 %v316
    %328 = vmatpush.msra.mxu0 %v315
    %329 = vmatpush.msra.mxu0 %v314
    %330 = vmatpush.msra.mxu0 %v313
    %331 = vmatpush.msra.mxu0 %v312
    %332 = vmatpush.msra.mxu0 %v311
    %333 = vmatpush.msra.mxu0 %v310
    %334 = vmatpush.msra.mxu0 %v309
    %335 = vmatpush.msra.mxu0 %v308
    %336 = vmatpush.msra.mxu0 %v307
    %337 = vmatpush.msra.mxu0 %v306
    %338 = vmatmul.f32.gmra.mxu0 %v238
    %v339 = vpop.f32.mrf.mxu0
    %v340 = vadd.f32 0.0, %v339
    %341 = vmatmul.f32.gmra.mxu0 %v241
    %v342 = vpop.f32.mrf.mxu0
    %v343 = vadd.f32 0.0, %v342
    %344 = vmatmul.f32.gmra.mxu0 %v244
    %v345 = vpop.f32.mrf.mxu0
    %v346 = vadd.f32 0.0, %v345
    %347 = vmatmul.f32.gmra.mxu0 %v247
    %v348 = vpop.f32.mrf.mxu0
    %v349 = vadd.f32 0.0, %v348
    %350 = vmatmul.f32.gmra.mxu0 %v250
    %v351 = vpop.f32.mrf.mxu0
    %v352 = vadd.f32 0.0, %v351
    %353 = vmatmul.f32.gmra.mxu0 %v253
    %v354 = vpop.f32.mrf.mxu0
    %v355 = vadd.f32 0.0, %v354
    %356 = vmatmul.f32.gmra.mxu0 %v256
    %v357 = vpop.f32.mrf.mxu0
    %v358 = vadd.f32 0.0, %v357
    %359 = vmatmul.f32.gmra.mxu0 %v259
    %v360 = vpop.f32.mrf.mxu0
    %v361 = vadd.f32 0.0, %v360
    %362 = vmatmul.f32.gmra.mxu0 %v262
    %v363 = vpop.f32.mrf.mxu0
    %v364 = vadd.f32 0.0, %v363
    %365 = vmatmul.f32.gmra.mxu0 %v265
    %v366 = vpop.f32.mrf.mxu0
    %v367 = vadd.f32 0.0, %v366
    %368 = vmatmul.f32.gmra.mxu0 %v268
    %v369 = vpop.f32.mrf.mxu0
    %v370 = vadd.f32 0.0, %v369
    %371 = vmatmul.f32.gmra.mxu0 %v271
    %v372 = vpop.f32.mrf.mxu0
    %v373 = vadd.f32 0.0, %v372
    %374 = vmatmul.f32.gmra.mxu0 %v274
    %v375 = vpop.f32.mrf.mxu0
    %v376 = vadd.f32 0.0, %v375
    %377 = vmatmul.f32.gmra.mxu0 %v277
    %v378 = vpop.f32.mrf.mxu0
    %v379 = vadd.f32 0.0, %v378
    %380 = vmatmul.f32.gmra.mxu0 %v280
    %v381 = vpop.f32.mrf.mxu0
    %v382 = vadd.f32 0.0, %v381
    %383 = vmatmul.f32.gmra.mxu0 %v283
    %v384 = vpop.f32.mrf.mxu0
    %v385 = vadd.f32 0.0, %v384
    %386 = vdwg.mxu0
    %387 = vmatpush.msra.mxu0 %v321
    %388 = vmatpush.msra.mxu0 %v320
    %389 = vmatpush.msra.mxu0 %v319
    %390 = vmatpush.msra.mxu0 %v318
    %391 = vmatpush.msra.mxu0 %v317
    %392 = vmatpush.msra.mxu0 %v316
    %393 = vmatpush.msra.mxu0 %v315
    %394 = vmatpush.msra.mxu0 %v314
    %395 = vmatpush.msra.mxu0 %v313
    %396 = vmatpush.msra.mxu0 %v312
    %397 = vmatpush.msra.mxu0 %v311
    %398 = vmatpush.msra.mxu0 %v310
    %399 = vmatpush.msra.mxu0 %v309
    %400 = vmatpush.msra.mxu0 %v308
    %401 = vmatpush.msra.mxu0 %v307
    %402 = vmatpush.msra.mxu0 %v306
    %403 = vmatmul.f32.gmra.mxu0 %v303
    %v404 = vpop.f32.mrf.mxu0
    %v405 = vadd.f32 0.0, %v404
    %406 = vdwg.mxu0
    %s407 = scalar_lea.vmem [#allocation7], 384
    %v408 = vld [vmem:[%s407] sm:$0xff]
    %v409 = vld [vmem:[%s407 + $0x8] sm:$0xff]
    %v410 = vld [vmem:[%s407 + $0x10] sm:$0xff]
    %v411 = vld [vmem:[%s407 + $0x18] sm:$0xff]
    %v412 = vld [vmem:[%s407 + $0x20] sm:$0xff]
    %v413 = vld [vmem:[%s407 + $0x28] sm:$0xff]
    %v414 = vld [vmem:[%s407 + $0x30] sm:$0xff]
    %v415 = vld [vmem:[%s407 + $0x38] sm:$0xff]
    %v416 = vld [vmem:[%s407 + $0x40] sm:$0xff]
    %v417 = vld [vmem:[%s407 + $0x48] sm:$0xff]
    %v418 = vld [vmem:[%s407 + $0x50] sm:$0xff]
    %v419 = vld [vmem:[%s407 + $0x58] sm:$0xff]
    %v420 = vld [vmem:[%s407 + $0x60] sm:$0xff]
    %v421 = vld [vmem:[%s407 + $0x68] sm:$0xff]
    %v422 = vld [vmem:[%s407 + $0x70] sm:$0xff]
    %v423 = vld [vmem:[%s407 + $0x78] sm:$0xff]
    %424 = vmatpush.msra.mxu0 %v423
    %425 = vmatpush.msra.mxu0 %v422
    %426 = vmatpush.msra.mxu0 %v421
    %427 = vmatpush.msra.mxu0 %v420
    %428 = vmatpush.msra.mxu0 %v419
    %429 = vmatpush.msra.mxu0 %v418
    %430 = vmatpush.msra.mxu0 %v417
    %431 = vmatpush.msra.mxu0 %v416
    %432 = vmatpush.msra.mxu0 %v415
    %433 = vmatpush.msra.mxu0 %v414
    %434 = vmatpush.msra.mxu0 %v413
    %435 = vmatpush.msra.mxu0 %v412
    %436 = vmatpush.msra.mxu0 %v411
    %437 = vmatpush.msra.mxu0 %v410
    %438 = vmatpush.msra.mxu0 %v409
    %439 = vmatpush.msra.mxu0 %v408
    %440 = vmatmul.f32.gmra.mxu0 %v340
    %v441 = vpop.f32.mrf.mxu0
    %v442 = vadd.f32 0.0, %v441
    %443 = vmatmul.f32.gmra.mxu0 %v343
    %v444 = vpop.f32.mrf.mxu0
    %v445 = vadd.f32 0.0, %v444
    %446 = vmatmul.f32.gmra.mxu0 %v346
    %v447 = vpop.f32.mrf.mxu0
    %v448 = vadd.f32 0.0, %v447
    %449 = vmatmul.f32.gmra.mxu0 %v349
    %v450 = vpop.f32.mrf.mxu0
    %v451 = vadd.f32 0.0, %v450
    %452 = vmatmul.f32.gmra.mxu0 %v352
    %v453 = vpop.f32.mrf.mxu0
    %v454 = vadd.f32 0.0, %v453
    %455 = vmatmul.f32.gmra.mxu0 %v355
    %v456 = vpop.f32.mrf.mxu0
    %v457 = vadd.f32 0.0, %v456
    %458 = vmatmul.f32.gmra.mxu0 %v358
    %v459 = vpop.f32.mrf.mxu0
    %v460 = vadd.f32 0.0, %v459
    %461 = vmatmul.f32.gmra.mxu0 %v361
    %v462 = vpop.f32.mrf.mxu0
    %v463 = vadd.f32 0.0, %v462
    %464 = vmatmul.f32.gmra.mxu0 %v364
    %v465 = vpop.f32.mrf.mxu0
    %v466 = vadd.f32 0.0, %v465
    %467 = vmatmul.f32.gmra.mxu0 %v367
    %v468 = vpop.f32.mrf.mxu0
    %v469 = vadd.f32 0.0, %v468
    %470 = vmatmul.f32.gmra.mxu0 %v370
    %v471 = vpop.f32.mrf.mxu0
    %v472 = vadd.f32 0.0, %v471
    %473 = vmatmul.f32.gmra.mxu0 %v373
    %v474 = vpop.f32.mrf.mxu0
    %v475 = vadd.f32 0.0, %v474
    %476 = vmatmul.f32.gmra.mxu0 %v376
    %v477 = vpop.f32.mrf.mxu0
    %v478 = vadd.f32 0.0, %v477
    %479 = vmatmul.f32.gmra.mxu0 %v379
    %v480 = vpop.f32.mrf.mxu0
    %v481 = vadd.f32 0.0, %v480
    %482 = vmatmul.f32.gmra.mxu0 %v382
    %v483 = vpop.f32.mrf.mxu0
    %v484 = vadd.f32 0.0, %v483
    %485 = vmatmul.f32.gmra.mxu0 %v385
    %v486 = vpop.f32.mrf.mxu0
    %v487 = vadd.f32 0.0, %v486
    %488 = vdwg.mxu0
    %489 = vmatpush.msra.mxu0 %v423
    %490 = vmatpush.msra.mxu0 %v422
    %491 = vmatpush.msra.mxu0 %v421
    %492 = vmatpush.msra.mxu0 %v420
    %493 = vmatpush.msra.mxu0 %v419
    %494 = vmatpush.msra.mxu0 %v418
    %495 = vmatpush.msra.mxu0 %v417
    %496 = vmatpush.msra.mxu0 %v416
    %497 = vmatpush.msra.mxu0 %v415
    %498 = vmatpush.msra.mxu0 %v414
    %499 = vmatpush.msra.mxu0 %v413
    %500 = vmatpush.msra.mxu0 %v412
    %501 = vmatpush.msra.mxu0 %v411
    %502 = vmatpush.msra.mxu0 %v410
    %503 = vmatpush.msra.mxu0 %v409
    %504 = vmatpush.msra.mxu0 %v408
    %505 = vmatmul.f32.gmra.mxu0 %v405
    %v506 = vpop.f32.mrf.mxu0
    %v507 = vadd.f32 0.0, %v506
    %508 = vdwg.mxu0
    %v509 = vld [vmem:[#allocation8] sm:$0xff]
    %v510 = vld [vmem:[#allocation8 + $0x8] sm:$0xff]
    %v511 = vld [vmem:[#allocation8 + $0x10] sm:$0xff]
    %v512 = vld [vmem:[#allocation8 + $0x18] sm:$0xff]
    %v513 = vld [vmem:[#allocation8 + $0x20] sm:$0xff]
    %v514 = vld [vmem:[#allocation8 + $0x28] sm:$0xff]
    %v515 = vld [vmem:[#allocation8 + $0x30] sm:$0xff]
    %v516 = vld [vmem:[#allocation8 + $0x38] sm:$0xff]
    %v517 = vld [vmem:[#allocation8 + $0x40] sm:$0xff]
    %v518 = vld [vmem:[#allocation8 + $0x48] sm:$0xff]
    %v519 = vld [vmem:[#allocation8 + $0x50] sm:$0xff]
    %v520 = vld [vmem:[#allocation8 + $0x58] sm:$0xff]
    %v521 = vld [vmem:[#allocation8 + $0x60] sm:$0xff]
    %v522 = vld [vmem:[#allocation8 + $0x68] sm:$0xff]
    %v523 = vld [vmem:[#allocation8 + $0x70] sm:$0xff]
    %v524 = vld [vmem:[#allocation8 + $0x78] sm:$0xff]
    %525 = vmatpush.msra.mxu0 %v524
    %526 = vmatpush.msra.mxu0 %v523
    %527 = vmatpush.msra.mxu0 %v522
    %528 = vmatpush.msra.mxu0 %v521
    %529 = vmatpush.msra.mxu0 %v520
    %530 = vmatpush.msra.mxu0 %v519
    %531 = vmatpush.msra.mxu0 %v518
    %532 = vmatpush.msra.mxu0 %v517
    %533 = vmatpush.msra.mxu0 %v516
    %534 = vmatpush.msra.mxu0 %v515
    %535 = vmatpush.msra.mxu0 %v514
    %536 = vmatpush.msra.mxu0 %v513
    %537 = vmatpush.msra.mxu0 %v512
    %538 = vmatpush.msra.mxu0 %v511
    %539 = vmatpush.msra.mxu0 %v510
    %540 = vmatpush.msra.mxu0 %v509
    %541 = vmatmul.f32.gmra.mxu0 %v442
    %v542 = vpop.f32.mrf.mxu0
    %v543 = vadd.f32 0.0, %v542
    %544 = vmatmul.f32.gmra.mxu0 %v445
    %v545 = vpop.f32.mrf.mxu0
    %v546 = vadd.f32 0.0, %v545
    %547 = vmatmul.f32.gmra.mxu0 %v448
    %v548 = vpop.f32.mrf.mxu0
    %v549 = vadd.f32 0.0, %v548
    %550 = vmatmul.f32.gmra.mxu0 %v451
    %v551 = vpop.f32.mrf.mxu0
    %v552 = vadd.f32 0.0, %v551
    %553 = vmatmul.f32.gmra.mxu0 %v454
    %v554 = vpop.f32.mrf.mxu0
    %v555 = vadd.f32 0.0, %v554
    %556 = vmatmul.f32.gmra.mxu0 %v457
    %v557 = vpop.f32.mrf.mxu0
    %v558 = vadd.f32 0.0, %v557
    %559 = vmatmul.f32.gmra.mxu0 %v460
    %v560 = vpop.f32.mrf.mxu0
    %v561 = vadd.f32 0.0, %v560
    %562 = vmatmul.f32.gmra.mxu0 %v463
    %v563 = vpop.f32.mrf.mxu0
    %v564 = vadd.f32 0.0, %v563
    %565 = vmatmul.f32.gmra.mxu0 %v466
    %v566 = vpop.f32.mrf.mxu0
    %v567 = vadd.f32 0.0, %v566
    %568 = vmatmul.f32.gmra.mxu0 %v469
    %v569 = vpop.f32.mrf.mxu0
    %v570 = vadd.f32 0.0, %v569
    %571 = vmatmul.f32.gmra.mxu0 %v472
    %v572 = vpop.f32.mrf.mxu0
    %v573 = vadd.f32 0.0, %v572
    %574 = vmatmul.f32.gmra.mxu0 %v475
    %v575 = vpop.f32.mrf.mxu0
    %v576 = vadd.f32 0.0, %v575
    %577 = vmatmul.f32.gmra.mxu0 %v478
    %v578 = vpop.f32.mrf.mxu0
    %v579 = vadd.f32 0.0, %v578
    %580 = vmatmul.f32.gmra.mxu0 %v481
    %v581 = vpop.f32.mrf.mxu0
    %v582 = vadd.f32 0.0, %v581
    %583 = vmatmul.f32.gmra.mxu0 %v484
    %v584 = vpop.f32.mrf.mxu0
    %v585 = vadd.f32 0.0, %v584
    %586 = vmatmul.f32.gmra.mxu0 %v487
    %v587 = vpop.f32.mrf.mxu0
    %v588 = vadd.f32 0.0, %v587
    %589 = vdwg.mxu0
    %590 = vst [vmem:[#allocation10] sm:$0xff] %v543
    %591 = vst [vmem:[#allocation10 + $0x8] sm:$0xff] %v546
    %592 = vst [vmem:[#allocation10 + $0x10] sm:$0xff] %v549
    %593 = vst [vmem:[#allocation10 + $0x18] sm:$0xff] %v552
    %594 = vst [vmem:[#allocation10 + $0x20] sm:$0xff] %v555
    %595 = vst [vmem:[#allocation10 + $0x28] sm:$0xff] %v558
    %596 = vst [vmem:[#allocation10 + $0x30] sm:$0xff] %v561
    %597 = vst [vmem:[#allocation10 + $0x38] sm:$0xff] %v564
    %598 = vst [vmem:[#allocation10 + $0x40] sm:$0xff] %v567
    %599 = vst [vmem:[#allocation10 + $0x48] sm:$0xff] %v570
    %600 = vst [vmem:[#allocation10 + $0x50] sm:$0xff] %v573
    %601 = vst [vmem:[#allocation10 + $0x58] sm:$0xff] %v576
    %602 = vst [vmem:[#allocation10 + $0x60] sm:$0xff] %v579
    %603 = vst [vmem:[#allocation10 + $0x68] sm:$0xff] %v582
    %604 = vst [vmem:[#allocation10 + $0x70] sm:$0xff] %v585
    %605 = vst [vmem:[#allocation10 + $0x78] sm:$0xff] %v588
    %v606 = vld [vmem:[%s4] sm:$0x1]
    %607 = vmatpush.msra.mxu0 %v524
    %608 = vmatpush.msra.mxu0 %v523
    %609 = vmatpush.msra.mxu0 %v522
    %610 = vmatpush.msra.mxu0 %v521
    %611 = vmatpush.msra.mxu0 %v520
    %612 = vmatpush.msra.mxu0 %v519
    %613 = vmatpush.msra.mxu0 %v518
    %614 = vmatpush.msra.mxu0 %v517
    %615 = vmatpush.msra.mxu0 %v516
    %616 = vmatpush.msra.mxu0 %v515
    %617 = vmatpush.msra.mxu0 %v514
    %618 = vmatpush.msra.mxu0 %v513
    %619 = vmatpush.msra.mxu0 %v512
    %620 = vmatpush.msra.mxu0 %v511
    %621 = vmatpush.msra.mxu0 %v510
    %622 = vmatpush.msra.mxu0 %v509
    %623 = vmatmul.f32.gmra.mxu0 %v507
    %v624 = vpop.f32.mrf.mxu0
    %v625 = vadd.f32 %v606, %v624
    %626 = vdwg.mxu0
    %627 = vst [vmem:[#allocation11] sm:$0x1] %v625
    // Predicated region
    $region38: #{tpu_custom_call.1} parent=1 // pred_check
      _
    $region39: #{tpu_custom_call.1} parent=1 // pred_check_branch
      %629 = sbr.rel (0) target = $region41
    $region40: #{tpu_custom_call.1} parent=1 // pred_region
      %631 = vsyncadd [#allocation4], 0
      %s632 = sshll.u32 [#allocation10], 4
      %s633 = int_to_ptr.vmem [resolvable:$true] %s632
      %s634 = sshll.u32 %s5, 4
      %s635 = int_to_ptr.hbm [resolvable:$true] %s634
      %640 = dma.vmem_to_hbm [thread:$0]  %s633, 2048, %s635, [#allocation4], 128, 128, 8
    $region41: #{tpu_custom_call.1} parent=1 // pred_fallthru
      _
    // Predicated region
    $region42: #{tpu_custom_call.1} parent=1 // pred_check
      _
    $region43: #{tpu_custom_call.1} parent=1 // pred_check_branch
      %642 = sbr.rel (0) target = $region45
    $region44: #{tpu_custom_call.1} parent=1 // pred_region
      %644 = vsyncadd [#allocation12], 0
      %s646 = sshll.u32 [#allocation11], 4
      %s647 = int_to_ptr.vmem [resolvable:$true] %s646
      %s648 = sshll.u32 %s6, 4
      %s649 = int_to_ptr.hbm [resolvable:$true] %s648
      %651 = dma.vmem_to_hbm [thread:$0]  %s647, 16, %s649, [#allocation12]
    $region45: #{tpu_custom_call.1} parent=1 // pred_fallthru
      _
    // Predicated region
    $region46: #{tpu_custom_call.1} parent=1 // pred_check
      _
    $region47: #{tpu_custom_call.1} parent=1 // pred_check_branch
      %653 = sbr.rel (0) target = $region49
    $region48: #{tpu_custom_call.1} parent=1 // pred_region
      %655 = dma.done [#allocation4], 2048
    $region49: #{tpu_custom_call.1} parent=1 // pred_fallthru
      _
    // Predicated region
    $region50: #{tpu_custom_call.1} parent=1 // pred_check
      _
    $region51: #{tpu_custom_call.1} parent=1 // pred_check_branch
      %657 = sbr.rel (0) target = $region53
    $region52: #{tpu_custom_call.1} parent=1 // pred_region
      %659 = dma.done [#allocation12], 16
    $region53: #{tpu_custom_call.1} parent=1 // pred_fallthru
      _
    %660 = vsyncpa [#allocation3], 1
    %661 = vsyncpa [#allocation6], 1
    %662 = vsyncpa [#allocation9], 1
    %663 = vsyncpa [#allocation4], 1
    %664 = vsyncpa [#allocation12], 1

</llo_original>
